<compile_context>
chip_gen: v5e
topology: v5e:2x2
jax: 0.10.0
libtpu: 0.0.40
codegen_flags: <defaults>
</compile_context>

<pallas_src>
import jax
import jax.numpy as jnp
from jax import lax
from jax.experimental import pallas as pl
from jax.experimental.pallas import tpu as pltpu

_PAD_SQ = 1e30   # sentinel |x|^2/T for padded columns -> exp underflows to 0.0
_EPS = 1e-8


def _snnl_kernel(xr_ref, xc_ref, sqr_ref, sqc_ref, labr_ref, labc_ref,
                 loss_ref, num_acc, den_acc):
    it = pl.program_id(0)          # row tile (parallel)
    jt = pl.program_id(1)          # column tile (reduction, arbitrary)

    @pl.when(jt == 0)
    def _init():
        num_acc[...] = jnp.zeros_like(num_acc)
        den_acc[...] = jnp.zeros_like(den_acc)

    # (2/T) <x_i, x_j> via an NT dot_general on the MXU (row operand already
    # carries the 2/T factor; no transpose materialisation, no in-kernel casts).
    gram = lax.dot_general(xr_ref[...], xc_ref[...],
                           dimension_numbers=(((1,), (1,)), ((), ())),
                           preferred_element_type=jnp.float32)       # (tm, tn)

    # arg = -d_ij / T = (2/T)<x_i,x_j> - |x_i|^2/T - |x_j|^2/T ; clamp since d >= 0.
    arg = jnp.minimum(gram - sqr_ref[...] - sqc_ref[...], 0.0)
    e = jnp.exp(arg)                                                 # EUP exp, f32
    same = labr_ref[...] == labc_ref[...]                            # (tm, tn) bool

    def _accumulate(ev):
        num_acc[...] += jnp.sum(jnp.where(same, ev, 0.0), axis=-1, keepdims=True)
        den_acc[...] += jnp.sum(ev, axis=-1, keepdims=True)

    # j == i exclusion only on diagonal tiles; off-diagonal steps pay no mask.
    @pl.when(it == jt)
    def _diag_tile():
        tm, tn = e.shape
        rid = lax.broadcasted_iota(jnp.int32, (tm, tn), 0)
        cid = lax.broadcasted_iota(jnp.int32, (tm, tn), 1)
        _accumulate(jnp.where(rid == cid, 0.0, e))

    @pl.when(it != jt)
    def _off_diag_tile():
        _accumulate(e)

    @pl.when(jt == pl.num_programs(1) - 1)
    def _finalize():
        # -log((num + eps) / (den + eps)) == log(den + eps) - log(num + eps).
        loss_ref[...] = jnp.log(den_acc[...] + _EPS) - jnp.log(num_acc[...] + _EPS)


def _round_up(v: int, m: int) -> int:
    return ((v + m - 1) // m) * m


def _choose_tile(n: int, d: int, max_tile: int) -> int:
    """Pick a 128-multiple tile minimizing padding under a D-aware VMEM budget;
    prefer >=2 row tiles so both v7x TensorCores get work."""
    max_tile = max(128, (int(max_tile) // 128) * 128)
    n128 = _round_up(max(n, 1), 128)
    budget = 24 * 1024 * 1024      # double-buffered (tile,D) operands + (tile,tile) temps
    best, best_key = 128, None
    for t in (512, 384, 256, 128):
        if t > max_tile or t > n128:
            continue
        est = 4 * t * d * 4 + 4 * t * t * 4
        if est > budget and t > 128:
            continue
        n_pad = _round_up(n, t)
        key = (n_pad - n,                       # minimize padding waste
               1 if (n_pad // t) < 2 else 0,    # prefer >=2 row tiles (megacore)
               -t)                              # then larger tiles (fewer grid steps)
        if best_key is None or key < best_key:
            best, best_key = t, key
    return best


def snnl_loss(embeddings: jax.Array, labels: jax.Array, temperature: float = 1.0,
              *, max_tile: int = 512, bf16_gram: bool = False) -> jax.Array:
    """Pallas TPU implementation of SNNLLoss.forward."""
    N, D = embeddings.shape
    if N <= 1:
        return jnp.float32(0.0)

    tile = _choose_tile(N, D, max_tile)
    n_pad = _round_up(N, tile)
    gt = n_pad // tile
    inv_t = 1.0 / float(temperature)

    x32 = embeddings.astype(jnp.float32)
    lab = labels.astype(jnp.int32).reshape(-1)

    # One-time O(N*D) precompute: squared norms already divided by T; the 2/T
    # factor rides on the row operand of the kernel matmul.
    sq = jnp.sum(x32 * x32, axis=-1) * inv_t
    # bf16_gram is opt-in (cancellation in |xi|^2+|xj|^2-2<xi,xj> can perturb
    # small distances at low temperature); default keeps the operand dtype.
    op_dtype = jnp.bfloat16 if bf16_gram else embeddings.dtype
    x_row = (x32 * (2.0 * inv_t)).astype(op_dtype)
    x_col = embeddings.astype(op_dtype)

    pad = n_pad - N
    if pad:
        x_row = jnp.pad(x_row, ((0, pad), (0, 0)))
        x_col = jnp.pad(x_col, ((0, pad), (0, 0)))
        lab_p = jnp.pad(lab, (0, pad), constant_values=-1)       # sentinel label
        sq_p = jnp.pad(sq, (0, pad), constant_values=_PAD_SQ)    # exp -> 0 sentinel
    else:
        lab_p, sq_p = lab, sq

    sq_row = sq_p.reshape(n_pad, 1)
    sq_col = sq_p.reshape(1, n_pad)
    lab_row = lab_p.reshape(n_pad, 1)
    lab_col = lab_p.reshape(1, n_pad)

    loss_rows = pl.pallas_call(
        _snnl_kernel,
        out_shape=jax.ShapeDtypeStruct((n_pad, 1), jnp.float32),
        grid_spec=pltpu.PrefetchScalarGridSpec(
            num_scalar_prefetch=0,
            grid=(gt, gt),
            in_specs=[
                pl.BlockSpec((tile, D), lambda i, j: (i, 0)),   # x rows (scaled by 2/T)
                pl.BlockSpec((tile, D), lambda i, j: (j, 0)),   # x cols
                pl.BlockSpec((tile, 1), lambda i, j: (i, 0)),   # |x_i|^2 / T
                pl.BlockSpec((1, tile), lambda i, j: (0, j)),   # |x_j|^2 / T (sentinel on pad)
                pl.BlockSpec((tile, 1), lambda i, j: (i, 0)),   # labels (rows)
                pl.BlockSpec((1, tile), lambda i, j: (0, j)),   # labels (cols, -1 on pad)
            ],
            out_specs=pl.BlockSpec((tile, 1), lambda i, j: (i, 0)),
            scratch_shapes=[pltpu.VMEM((tile, 1), jnp.float32),   # num accumulator
                            pltpu.VMEM((tile, 1), jnp.float32)],  # den accumulator
        ),
        compiler_params=pltpu.CompilerParams(
            dimension_semantics=("parallel", "arbitrary"),
            vmem_limit_bytes=32 * 1024 * 1024),
    )(x_row, x_col, sq_row, sq_col, lab_row, lab_col)

    # Row validity depends only on labels (no distances): valid[i] iff some
    # other j < N shares lab_i.  O(N log N) via sort + searchsorted.
    sorted_lab = jnp.sort(lab)
    left = jnp.searchsorted(sorted_lab, lab, side='left')
    right = jnp.searchsorted(sorted_lab, lab, side='right')
    valid = (right - left) >= 2

    per_row = loss_rows[:N, 0]
    count = jnp.sum(valid.astype(jnp.float32))
    total = jnp.sum(jnp.where(valid, per_row, 0.0))
    return jnp.where(count > 0.0, total / jnp.maximum(count, 1.0), jnp.float32(0.0))


def _snnl_reference(embeddings, labels, temperature=1.0):
    """Pure-JAX reference mirroring the PyTorch loop semantics."""
    N = embeddings.shape[0]
    x = embeddings.astype(jnp.float32)
    d = jnp.sum((x[:, None, :] - x[None, :, :]) ** 2, axis=-1)
    not_self = ~jnp.eye(N, dtype=bool)
    same = (labels[:, None] == labels[None, :]) & not_self
    e = jnp.exp(-d / temperature)
    num = jnp.sum(jnp.where(same, e, 0.0), axis=-1)
    den = jnp.sum(jnp.where(not_self, e, 0.0), axis=-1)
    valid = jnp.sum(same, axis=-1) > 0
    per_row = -jnp.log((num + 1e-8) / (den + 1e-8))
    loss = jnp.sum(jnp.where(valid, per_row, 0.0))
    count = jnp.sum(valid.astype(jnp.float32))
    return jnp.where(count > 0, loss / jnp.maximum(count, 1.0), 0.0)


if __name__ == "__main__":
    key = jax.random.PRNGKey(0)
    k1, k2, k3, k4, k5 = jax.random.split(key, 5)

    # Case 1: small batch of embeddings + int labels (module spec shapes).
    N, D = 8, 32
    emb = 0.3 * jax.random.normal(k1, (N, D), dtype=jnp.float32)
    lab = jax.random.randint(k2, (N,), 0, 3, dtype=jnp.int32)
    out = jax.block_until_ready(snnl_loss(emb, lab, temperature=2.0))
    ref = _snnl_reference(emb, lab, temperature=2.0)
    assert jnp.allclose(out, ref, rtol=1e-4, atol=1e-5), (out, ref)

    # Case 2: different N / more classes — exercises rows with no same-label
    # partner and the padding path (N=10 -> 128).
    N2, D2 = 10, 32
    emb2 = 0.3 * jax.random.normal(k3, (N2, D2), dtype=jnp.float32)
    lab2 = jax.random.randint(k4, (N2,), 0, 6, dtype=jnp.int32)
    out2 = jax.block_until_ready(snnl_loss(emb2, lab2, temperature=1.0))
    ref2 = _snnl_reference(emb2, lab2, temperature=1.0)
    assert jnp.allclose(out2, ref2, rtol=1e-4, atol=1e-5), (out2, ref2)

    # Case 3: all labels distinct -> no valid rows -> loss is exactly 0.
    N3, D3 = 6, 32
    emb3 = 0.3 * jax.random.normal(k5, (N3, D3), dtype=jnp.float32)
    lab3 = jnp.arange(N3, dtype=jnp.int32)
    out3 = jax.block_until_ready(snnl_loss(emb3, lab3, temperature=1.0))
    ref3 = _snnl_reference(emb3, lab3, temperature=1.0)
    assert jnp.allclose(out3, ref3, rtol=1e-4, atol=1e-5), (out3, ref3)

    print("KERNEL_OK")
</pallas_src>

<mosaic_0001>
module attributes {stable_mosaic.version = 11 : i64} {
  func.func @_snnl_kernel(%arg0: i32, %arg1: i32, %arg2: memref<128x32xf32, #tpu.memory_space<vmem>>, %arg3: memref<128x32xf32, #tpu.memory_space<vmem>>, %arg4: memref<128x1xf32, #tpu.memory_space<vmem>>, %arg5: memref<1x128xf32, #tpu.memory_space<vmem>>, %arg6: memref<128x1xi32, #tpu.memory_space<vmem>>, %arg7: memref<1x128xi32, #tpu.memory_space<vmem>>, %arg8: memref<128x1xf32, #tpu.memory_space<vmem>>, %arg9: memref<128x1xf32, #tpu.memory_space<vmem>>, %arg10: memref<128x1xf32, #tpu.memory_space<vmem>>) attributes {dimension_semantics = [#tpu.dimension_semantics<parallel>, #tpu.dimension_semantics<arbitrary>], iteration_bounds = array<i64: 1, 1>, scalar_prefetch = 0 : i64, scratch_operands = 2 : i64, tpu.core_type = #tpu.core_type<tc>, window_params = [{transform_indices = @transform_0, window_bounds = array<i64: 128, 32>}, {transform_indices = @transform_1, window_bounds = array<i64: 128, 32>}, {transform_indices = @transform_2, window_bounds = array<i64: 128, 1>}, {transform_indices = @transform_3, window_bounds = array<i64: 1, 128>}, {transform_indices = @transform_4, window_bounds = array<i64: 128, 1>}, {transform_indices = @transform_5, window_bounds = array<i64: 1, 128>}, {transform_indices = @transform_6, window_bounds = array<i64: 128, 1>}]} {
    %c0_i32 = arith.constant 0 : i32
    %0 = arith.cmpi eq, %arg1, %c0_i32 : i32
    %1 = arith.extui %0 : i1 to i32
    %c0_i32_0 = arith.constant 0 : i32
    %2 = arith.cmpi ne, %1, %c0_i32_0 : i32
    scf.if %2 {
      %cst_17 = arith.constant 0.000000e+00 : f32
      %29 = vector.broadcast %cst_17 : f32 to vector<128x1xf32>
      %c0_18 = arith.constant 0 : index
      %c0_19 = arith.constant 0 : index
      %30 = vector.load %arg9[%c0_18, %c0_19] : memref<128x1xf32, #tpu.memory_space<vmem>>, vector<128x1xf32>
      tpu.vector_store %arg9[%c0_18, %c0_19], %29 {strides = array<i32>} : memref<128x1xf32, #tpu.memory_space<vmem>>, vector<128x1xf32>,
      %cst_20 = arith.constant 0.000000e+00 : f32
      %31 = vector.broadcast %cst_20 : f32 to vector<128x1xf32>
      %c0_21 = arith.constant 0 : index
      %c0_22 = arith.constant 0 : index
      %32 = vector.load %arg10[%c0_21, %c0_22] : memref<128x1xf32, #tpu.memory_space<vmem>>, vector<128x1xf32>
      tpu.vector_store %arg10[%c0_21, %c0_22], %31 {strides = array<i32>} : memref<128x1xf32, #tpu.memory_space<vmem>>, vector<128x1xf32>,
    } else {
    }
    %c0 = arith.constant 0 : index
    %c0_1 = arith.constant 0 : index
    %3 = vector.load %arg2[%c0, %c0_1] : memref<128x32xf32, #tpu.memory_space<vmem>>, vector<128x32xf32>
    %c0_2 = arith.constant 0 : index
    %c0_3 = arith.constant 0 : index
    %4 = vector.load %arg3[%c0_2, %c0_3] : memref<128x32xf32, #tpu.memory_space<vmem>>, vector<128x32xf32>
    %cst = arith.constant dense<0.000000e+00> : vector<128x128xf32>
    %5 = tpu.matmul %3, %4, %cst {dimension_numbers = #tpu.dot_dimension_numbers<[1], [1], [0], [0], [0, 0, 1, 0], [], []>} : vector<128x32xf32>, vector<128x32xf32>, vector<128x128xf32> -> vector<128x128xf32>
    %c0_4 = arith.constant 0 : index
    %c0_5 = arith.constant 0 : index
    %6 = vector.load %arg4[%c0_4, %c0_5] : memref<128x1xf32, #tpu.memory_space<vmem>>, vector<128x1xf32>
    %7 = vector.broadcast %6 : vector<128x1xf32> to vector<128x128xf32>
    %8 = arith.subf %5, %7 : vector<128x128xf32>
    %c0_6 = arith.constant 0 : index
    %c0_7 = arith.constant 0 : index
    %9 = vector.load %arg5[%c0_6, %c0_7] : memref<1x128xf32, #tpu.memory_space<vmem>>, vector<1x128xf32>
    %10 = vector.broadcast %9 : vector<1x128xf32> to vector<128x128xf32>
    %11 = arith.subf %8, %10 : vector<128x128xf32>
    %cst_8 = arith.constant 0.000000e+00 : f32
    %12 = vector.broadcast %cst_8 : f32 to vector<128x128xf32>
    %13 = arith.minimumf %11, %12 : vector<128x128xf32>
    %14 = math.exp %13 : vector<128x128xf32>
    %c0_9 = arith.constant 0 : index
    %c0_10 = arith.constant 0 : index
    %15 = vector.load %arg6[%c0_9, %c0_10] : memref<128x1xi32, #tpu.memory_space<vmem>>, vector<128x1xi32>
    %c0_11 = arith.constant 0 : index
    %c0_12 = arith.constant 0 : index
    %16 = vector.load %arg7[%c0_11, %c0_12] : memref<1x128xi32, #tpu.memory_space<vmem>>, vector<1x128xi32>
    %17 = vector.broadcast %15 : vector<128x1xi32> to vector<128x128xi32>
    %18 = vector.broadcast %16 : vector<1x128xi32> to vector<128x128xi32>
    %19 = arith.cmpi eq, %17, %18 : vector<128x128xi32>
    %20 = arith.cmpi eq, %arg0, %arg1 : i32
    %21 = arith.extui %20 : i1 to i32
    %c0_i32_13 = arith.constant 0 : i32
    %22 = arith.cmpi ne, %21, %c0_i32_13 : i32
    scf.if %22 {
      %29 = tpu.iota {dimensions = array<i32: 0>} : vector<128x128xi32>
      %30 = tpu.iota {dimensions = array<i32: 1>} : vector<128x128xi32>
      %31 = arith.cmpi eq, %29, %30 : vector<128x128xi32>
      %cst_17 = arith.constant 0.000000e+00 : f32
      %32 = vector.broadcast %cst_17 : f32 to vector<128x128xf32>
      %33 = arith.select %31, %32, %14 : vector<128x128xi1>, vector<128x128xf32>
      %c0_18 = arith.constant 0 : index
      %c0_19 = arith.constant 0 : index
      %34 = vector.load %arg9[%c0_18, %c0_19] : memref<128x1xf32, #tpu.memory_space<vmem>>, vector<128x1xf32>
      %cst_20 = arith.constant 0.000000e+00 : f32
      %35 = vector.broadcast %cst_20 : f32 to vector<128x128xf32>
      %36 = arith.select %19, %33, %35 : vector<128x128xi1>, vector<128x128xf32>
      %cst_21 = arith.constant dense<0.000000e+00> : vector<128xf32>
      %37 = vector.multi_reduction <add>, %36, %cst_21 [1] : vector<128x128xf32> to vector<128xf32>
      %38 = vector.shape_cast %37 : vector<128xf32> to vector<128x1xf32>
      %39 = arith.addf %34, %38 : vector<128x1xf32>
      %c0_22 = arith.constant 0 : index
      %c0_23 = arith.constant 0 : index
      %40 = vector.load %arg9[%c0_22, %c0_23] : memref<128x1xf32, #tpu.memory_space<vmem>>, vector<128x1xf32>
      tpu.vector_store %arg9[%c0_22, %c0_23], %39 {strides = array<i32>} : memref<128x1xf32, #tpu.memory_space<vmem>>, vector<128x1xf32>,
      %c0_24 = arith.constant 0 : index
      %c0_25 = arith.constant 0 : index
      %41 = vector.load %arg10[%c0_24, %c0_25] : memref<128x1xf32, #tpu.memory_space<vmem>>, vector<128x1xf32>
      %cst_26 = arith.constant dense<0.000000e+00> : vector<128xf32>
      %42 = vector.multi_reduction <add>, %33, %cst_26 [1] : vector<128x128xf32> to vector<128xf32>
      %43 = vector.shape_cast %42 : vector<128xf32> to vector<128x1xf32>
      %44 = arith.addf %41, %43 : vector<128x1xf32>
      %c0_27 = arith.constant 0 : index
      %c0_28 = arith.constant 0 : index
      %45 = vector.load %arg10[%c0_27, %c0_28] : memref<128x1xf32, #tpu.memory_space<vmem>>, vector<128x1xf32>
      tpu.vector_store %arg10[%c0_27, %c0_28], %44 {strides = array<i32>} : memref<128x1xf32, #tpu.memory_space<vmem>>, vector<128x1xf32>,
    } else {
    }
    %23 = arith.cmpi ne, %arg0, %arg1 : i32
    %24 = arith.extui %23 : i1 to i32
    %c0_i32_14 = arith.constant 0 : i32
    %25 = arith.cmpi ne, %24, %c0_i32_14 : i32
    scf.if %25 {
      %c0_17 = arith.constant 0 : index
      %c0_18 = arith.constant 0 : index
      %29 = vector.load %arg9[%c0_17, %c0_18] : memref<128x1xf32, #tpu.memory_space<vmem>>, vector<128x1xf32>
      %cst_19 = arith.constant 0.000000e+00 : f32
      %30 = vector.broadcast %cst_19 : f32 to vector<128x128xf32>
      %31 = arith.select %19, %14, %30 : vector<128x128xi1>, vector<128x128xf32>
      %cst_20 = arith.constant dense<0.000000e+00> : vector<128xf32>
      %32 = vector.multi_reduction <add>, %31, %cst_20 [1] : vector<128x128xf32> to vector<128xf32>
      %33 = vector.shape_cast %32 : vector<128xf32> to vector<128x1xf32>
      %34 = arith.addf %29, %33 : vector<128x1xf32>
      %c0_21 = arith.constant 0 : index
      %c0_22 = arith.constant 0 : index
      %35 = vector.load %arg9[%c0_21, %c0_22] : memref<128x1xf32, #tpu.memory_space<vmem>>, vector<128x1xf32>
      tpu.vector_store %arg9[%c0_21, %c0_22], %34 {strides = array<i32>} : memref<128x1xf32, #tpu.memory_space<vmem>>, vector<128x1xf32>,
      %c0_23 = arith.constant 0 : index
      %c0_24 = arith.constant 0 : index
      %36 = vector.load %arg10[%c0_23, %c0_24] : memref<128x1xf32, #tpu.memory_space<vmem>>, vector<128x1xf32>
      %cst_25 = arith.constant dense<0.000000e+00> : vector<128xf32>
      %37 = vector.multi_reduction <add>, %14, %cst_25 [1] : vector<128x128xf32> to vector<128xf32>
      %38 = vector.shape_cast %37 : vector<128xf32> to vector<128x1xf32>
      %39 = arith.addf %36, %38 : vector<128x1xf32>
      %c0_26 = arith.constant 0 : index
      %c0_27 = arith.constant 0 : index
      %40 = vector.load %arg10[%c0_26, %c0_27] : memref<128x1xf32, #tpu.memory_space<vmem>>, vector<128x1xf32>
      tpu.vector_store %arg10[%c0_26, %c0_27], %39 {strides = array<i32>} : memref<128x1xf32, #tpu.memory_space<vmem>>, vector<128x1xf32>,
    } else {
    }
    %c0_i32_15 = arith.constant 0 : i32
    %26 = arith.cmpi eq, %arg1, %c0_i32_15 : i32
    %27 = arith.extui %26 : i1 to i32
    %c0_i32_16 = arith.constant 0 : i32
    %28 = arith.cmpi ne, %27, %c0_i32_16 : i32
    scf.if %28 {
      %c0_17 = arith.constant 0 : index
      %c0_18 = arith.constant 0 : index
      %29 = vector.load %arg10[%c0_17, %c0_18] : memref<128x1xf32, #tpu.memory_space<vmem>>, vector<128x1xf32>
      %cst_19 = arith.constant 9.99999993E-9 : f32
      %30 = vector.broadcast %cst_19 : f32 to vector<128x1xf32>
      %31 = arith.addf %29, %30 : vector<128x1xf32>
      %32 = math.log %31 : vector<128x1xf32>
      %c0_20 = arith.constant 0 : index
      %c0_21 = arith.constant 0 : index
      %33 = vector.load %arg9[%c0_20, %c0_21] : memref<128x1xf32, #tpu.memory_space<vmem>>, vector<128x1xf32>
      %cst_22 = arith.constant 9.99999993E-9 : f32
      %34 = vector.broadcast %cst_22 : f32 to vector<128x1xf32>
      %35 = arith.addf %33, %34 : vector<128x1xf32>
      %36 = math.log %35 : vector<128x1xf32>
      %37 = arith.subf %32, %36 : vector<128x1xf32>
      %c0_23 = arith.constant 0 : index
      %c0_24 = arith.constant 0 : index
      %38 = vector.load %arg8[%c0_23, %c0_24] : memref<128x1xf32, #tpu.memory_space<vmem>>, vector<128x1xf32>
      tpu.vector_store %arg8[%c0_23, %c0_24], %37 {strides = array<i32>} : memref<128x1xf32, #tpu.memory_space<vmem>>, vector<128x1xf32>,
    } else {
    }
    return
  }
  func.func @transform_0(%arg0: i32, %arg1: i32) -> (i32, i32) {
    %c0_i32 = arith.constant 0 : i32
    %c0_i32_0 = arith.constant 0 : i32
    return %arg0, %c0_i32 : i32, i32
  }
  func.func @transform_1(%arg0: i32, %arg1: i32) -> (i32, i32) {
    %c0_i32 = arith.constant 0 : i32
    %c0_i32_0 = arith.constant 0 : i32
    return %arg1, %c0_i32 : i32, i32
  }
  func.func @transform_2(%arg0: i32, %arg1: i32) -> (i32, i32) {
    %c0_i32 = arith.constant 0 : i32
    %c0_i32_0 = arith.constant 0 : i32
    return %arg0, %c0_i32 : i32, i32
  }
  func.func @transform_3(%arg0: i32, %arg1: i32) -> (i32, i32) {
    %c0_i32 = arith.constant 0 : i32
    %c0_i32_0 = arith.constant 0 : i32
    return %c0_i32, %arg1 : i32, i32
  }
  func.func @transform_4(%arg0: i32, %arg1: i32) -> (i32, i32) {
    %c0_i32 = arith.constant 0 : i32
    %c0_i32_0 = arith.constant 0 : i32
    return %arg0, %c0_i32 : i32, i32
  }
  func.func @transform_5(%arg0: i32, %arg1: i32) -> (i32, i32) {
    %c0_i32 = arith.constant 0 : i32
    %c0_i32_0 = arith.constant 0 : i32
    return %c0_i32, %arg1 : i32, i32
  }
  func.func @transform_6(%arg0: i32, %arg1: i32) -> (i32, i32) {
    %c0_i32 = arith.constant 0 : i32
    %c0_i32_0 = arith.constant 0 : i32
    return %arg0, %c0_i32 : i32, i32
  }
}

</mosaic_0001>

<llo_original>
// kernel: tpu_custom_call.1
$region0: #{tpu_custom_call.1}
  #allocation0 [shape = 'u32[]', space=smem, size = 0x4, offset = 0x4, fixed_abs, tag = 'smem constant byte address 0x4 - core index']
  #allocation1 [shape = 'u32[72,128]{1,0:T(1,128)}', space=vmem, size = 0x9000, scoped, tag = 'internal scratch']
  #allocation2 [shape = 'f32[128,1]{1,0:T(8,128)}', space=vmem, size = 0x10000, scoped, tag = 'scratch operand']
  #allocation3 [shape = 'f32[128,1]{1,0:T(8,128)}', space=vmem, size = 0x10000, scoped, tag = 'scratch operand']
  %s0 = inlined_call_operand.vmem [shape: f32[128,32], index: 0, kind: input, shape index: {}]
  %s1 = inlined_call_operand.vmem [shape: f32[128,32], index: 1, kind: input, shape index: {}]
  %s2 = inlined_call_operand.vmem [shape: f32[128,1], index: 2, kind: input, shape index: {}]
  %s3 = inlined_call_operand.vmem [shape: f32[1,128], index: 3, kind: input, shape index: {}]
  %s4 = inlined_call_operand.vmem [shape: s32[128,1], index: 4, kind: input, shape index: {}]
  %s5 = inlined_call_operand.vmem [shape: s32[1,128], index: 5, kind: input, shape index: {}]
  %s6 = inlined_call_operand.vmem [shape: f32[128,1], index: 6, kind: output, shape index: {}]
  %s7 = sld [smem:[#allocation0]]
  $region50: #{tpu_custom_call.1} parent=0
    _
  %s9 = ssub.s32 1, %s7
  %s10 = scalar_select 0, %s9, %s7
  // Predicated region
  $region2: #{tpu_custom_call.1} parent=0 // pred_check
    _
  $region3: #{tpu_custom_call.1} parent=0 // pred_check_branch
    %12 = sbr.rel (0) target = $region5
  $region4: #{tpu_custom_call.1} parent=0 // pred_region
    _
  $region5: #{tpu_custom_call.1} parent=0 // pred_fallthru
    _
  // Predicated region
  $region6: #{tpu_custom_call.1} parent=0 // pred_check
    _
  $region7: #{tpu_custom_call.1} parent=0 // pred_check_branch
    %14 = sbr.rel (0) target = $region9
  $region8: #{tpu_custom_call.1} parent=0 // pred_region
    _
  $region9: #{tpu_custom_call.1} parent=0 // pred_fallthru
    _
  // Predicated region
  $region10: #{tpu_custom_call.1} parent=0 // pred_check
    _
  $region11: #{tpu_custom_call.1} parent=0 // pred_check_branch
    %16 = sbr.rel (0) target = $region13
  $region12: #{tpu_custom_call.1} parent=0 // pred_region
    _
  $region13: #{tpu_custom_call.1} parent=0 // pred_fallthru
    _
  // Predicated region
  $region14: #{tpu_custom_call.1} parent=0 // pred_check
    _
  $region15: #{tpu_custom_call.1} parent=0 // pred_check_branch
    %18 = sbr.rel (0) target = $region17
  $region16: #{tpu_custom_call.1} parent=0 // pred_region
    _
  $region17: #{tpu_custom_call.1} parent=0 // pred_fallthru
    _
  // Predicated region
  $region18: #{tpu_custom_call.1} parent=0 // pred_check
    _
  $region19: #{tpu_custom_call.1} parent=0 // pred_check_branch
    %20 = sbr.rel (0) target = $region21
  $region20: #{tpu_custom_call.1} parent=0 // pred_region
    _
  $region21: #{tpu_custom_call.1} parent=0 // pred_fallthru
    _
  // Predicated region
  $region22: #{tpu_custom_call.1} parent=0 // pred_check
    _
  $region23: #{tpu_custom_call.1} parent=0 // pred_check_branch
    %22 = sbr.rel (0) target = $region25
  $region24: #{tpu_custom_call.1} parent=0 // pred_region
    _
  $region25: #{tpu_custom_call.1} parent=0 // pred_fallthru
    _
  %p23 = scmp.eq.s32.totalorder 0, 0
  // Predicated region
  $region26: #{tpu_custom_call.1} parent=0 // pred_check
    %p24 = pneg %p23
  $region27: #{tpu_custom_call.1} parent=0 // pred_check_branch
    %26 = sbr.rel (%p24) target = $region29
  $region28: #{tpu_custom_call.1} parent=0 // pred_region
    %vm27 = vcmask 7168
    %28 = vst.msk [vmem:[#allocation2] sm:$0xff] %vm27, 0.0
    %29 = vst.msk [vmem:[#allocation2 + $0x8] sm:$0xff] %vm27, 0.0
    %30 = vst.msk [vmem:[#allocation2 + $0x10] sm:$0xff] %vm27, 0.0
    %31 = vst.msk [vmem:[#allocation2 + $0x18] sm:$0xff] %vm27, 0.0
    %32 = vst.msk [vmem:[#allocation2 + $0x20] sm:$0xff] %vm27, 0.0
    %33 = vst.msk [vmem:[#allocation2 + $0x28] sm:$0xff] %vm27, 0.0
    %34 = vst.msk [vmem:[#allocation2 + $0x30] sm:$0xff] %vm27, 0.0
    %35 = vst.msk [vmem:[#allocation2 + $0x38] sm:$0xff] %vm27, 0.0
    %36 = vst.msk [vmem:[#allocation2 + $0x40] sm:$0xff] %vm27, 0.0
    %37 = vst.msk [vmem:[#allocation2 + $0x48] sm:$0xff] %vm27, 0.0
    %38 = vst.msk [vmem:[#allocation2 + $0x50] sm:$0xff] %vm27, 0.0
    %39 = vst.msk [vmem:[#allocation2 + $0x58] sm:$0xff] %vm27, 0.0
    %40 = vst.msk [vmem:[#allocation2 + $0x60] sm:$0xff] %vm27, 0.0
    %41 = vst.msk [vmem:[#allocation2 + $0x68] sm:$0xff] %vm27, 0.0
    %42 = vst.msk [vmem:[#allocation2 + $0x70] sm:$0xff] %vm27, 0.0
    %43 = vst.msk [vmem:[#allocation2 + $0x78] sm:$0xff] %vm27, 0.0
    %44 = vst.msk [vmem:[#allocation3] sm:$0xff] %vm27, 0.0
    %45 = vst.msk [vmem:[#allocation3 + $0x8] sm:$0xff] %vm27, 0.0
    %46 = vst.msk [vmem:[#allocation3 + $0x10] sm:$0xff] %vm27, 0.0
    %47 = vst.msk [vmem:[#allocation3 + $0x18] sm:$0xff] %vm27, 0.0
    %48 = vst.msk [vmem:[#allocation3 + $0x20] sm:$0xff] %vm27, 0.0
    %49 = vst.msk [vmem:[#allocation3 + $0x28] sm:$0xff] %vm27, 0.0
    %50 = vst.msk [vmem:[#allocation3 + $0x30] sm:$0xff] %vm27, 0.0
    %51 = vst.msk [vmem:[#allocation3 + $0x38] sm:$0xff] %vm27, 0.0
    %52 = vst.msk [vmem:[#allocation3 + $0x40] sm:$0xff] %vm27, 0.0
    %53 = vst.msk [vmem:[#allocation3 + $0x48] sm:$0xff] %vm27, 0.0
    %54 = vst.msk [vmem:[#allocation3 + $0x50] sm:$0xff] %vm27, 0.0
    %55 = vst.msk [vmem:[#allocation3 + $0x58] sm:$0xff] %vm27, 0.0
    %56 = vst.msk [vmem:[#allocation3 + $0x60] sm:$0xff] %vm27, 0.0
    %57 = vst.msk [vmem:[#allocation3 + $0x68] sm:$0xff] %vm27, 0.0
    %58 = vst.msk [vmem:[#allocation3 + $0x70] sm:$0xff] %vm27, 0.0
    %59 = vst.msk [vmem:[#allocation3 + $0x78] sm:$0xff] %vm27, 0.0
  $region29: #{tpu_custom_call.1} parent=0 // pred_fallthru
    _
  %v60 = vld [vmem:[%s0] sm:$0xff]
  %v61 = vld [vmem:[%s0 + $0x8] sm:$0xff]
  %v62 = vld [vmem:[%s0 + $0x10] sm:$0xff]
  %v63 = vld [vmem:[%s0 + $0x18] sm:$0xff]
  %v64 = vld [vmem:[%s0 + $0x20] sm:$0xff]
  %v65 = vld [vmem:[%s0 + $0x28] sm:$0xff]
  %v66 = vld [vmem:[%s0 + $0x30] sm:$0xff]
  %v67 = vld [vmem:[%s0 + $0x38] sm:$0xff]
  %v68 = vld [vmem:[%s0 + $0x40] sm:$0xff]
  %v69 = vld [vmem:[%s0 + $0x48] sm:$0xff]
  %v70 = vld [vmem:[%s0 + $0x50] sm:$0xff]
  %v71 = vld [vmem:[%s0 + $0x58] sm:$0xff]
  %v72 = vld [vmem:[%s0 + $0x60] sm:$0xff]
  %v73 = vld [vmem:[%s0 + $0x68] sm:$0xff]
  %v74 = vld [vmem:[%s0 + $0x70] sm:$0xff]
  %v75 = vld [vmem:[%s0 + $0x78] sm:$0xff]
  %v76 = vld [vmem:[%s1] sm:$0xff]
  %v77 = vld [vmem:[%s1 + $0x8] sm:$0xff]
  %v78 = vld [vmem:[%s1 + $0x10] sm:$0xff]
  %v79 = vld [vmem:[%s1 + $0x18] sm:$0xff]
  %v80 = vld [vmem:[%s1 + $0x20] sm:$0xff]
  %v81 = vld [vmem:[%s1 + $0x28] sm:$0xff]
  %v82 = vld [vmem:[%s1 + $0x30] sm:$0xff]
  %v83 = vld [vmem:[%s1 + $0x38] sm:$0xff]
  %v84 = vld [vmem:[%s1 + $0x40] sm:$0xff]
  %v85 = vld [vmem:[%s1 + $0x48] sm:$0xff]
  %v86 = vld [vmem:[%s1 + $0x50] sm:$0xff]
  %v87 = vld [vmem:[%s1 + $0x58] sm:$0xff]
  %v88 = vld [vmem:[%s1 + $0x60] sm:$0xff]
  %v89 = vld [vmem:[%s1 + $0x68] sm:$0xff]
  %v90 = vld [vmem:[%s1 + $0x70] sm:$0xff]
  %v91 = vld [vmem:[%s1 + $0x78] sm:$0xff]
  %vm92 = vcmask 261120
  %v94 = vsel %vm92, %v60, 0
  %v97 = vsel %vm92, %v61, 0
  %v100 = vsel %vm92, %v62, 0
  %v103 = vsel %vm92, %v63, 0
  %v106 = vsel %vm92, %v64, 0
  %v109 = vsel %vm92, %v65, 0
  %v112 = vsel %vm92, %v66, 0
  %v115 = vsel %vm92, %v67, 0
  %v118 = vsel %vm92, %v68, 0
  %v121 = vsel %vm92, %v69, 0
  %v124 = vsel %vm92, %v70, 0
  %v127 = vsel %vm92, %v71, 0
  %v130 = vsel %vm92, %v72, 0
  %v133 = vsel %vm92, %v73, 0
  %v136 = vsel %vm92, %v74, 0
  %v139 = vsel %vm92, %v75, 0
  %v142 = vsel %vm92, %v76, 0
  %v145 = vsel %vm92, %v77, 0
  %v148 = vsel %vm92, %v78, 0
  %v151 = vsel %vm92, %v79, 0
  %v154 = vsel %vm92, %v80, 0
  %v157 = vsel %vm92, %v81, 0
  %v160 = vsel %vm92, %v82, 0
  %v163 = vsel %vm92, %v83, 0
  %v166 = vsel %vm92, %v84, 0
  %v169 = vsel %vm92, %v85, 0
  %v172 = vsel %vm92, %v86, 0
  %v175 = vsel %vm92, %v87, 0
  %v178 = vsel %vm92, %v88, 0
  %v181 = vsel %vm92, %v89, 0
  %v184 = vsel %vm92, %v90, 0
  %v187 = vsel %vm92, %v91, 0
  %189 = vmatpush.xpose.msra.mxu0 %v187
  %190 = vmatpush.xpose.msra.mxu0 %v184
  %191 = vmatpush.xpose.msra.mxu0 %v181
  %192 = vmatpush.xpose.msra.mxu0 %v178
  %193 = vmatpush.xpose.msra.mxu0 %v175
  %194 = vmatpush.xpose.msra.mxu0 %v172
  %195 = vmatpush.xpose.msra.mxu0 %v169
  %196 = vmatpush.xpose.msra.mxu0 %v166
  %197 = vmatpush.xpose.msra.mxu0 %v163
  %198 = vmatpush.xpose.msra.mxu0 %v160
  %199 = vmatpush.xpose.msra.mxu0 %v157
  %200 = vmatpush.xpose.msra.mxu0 %v154
  %201 = vmatpush.xpose.msra.mxu0 %v151
  %202 = vmatpush.xpose.msra.mxu0 %v148
  %203 = vmatpush.xpose.msra.mxu0 %v145
  %204 = vmatpush.xpose.msra.mxu0 %v142
  %205 = vmatmul.f32.gmra.mxu0 %v94
  %v206 = vpop.f32.mrf.mxu0
  %v207 = vadd.f32 0.0, %v206
  %208 = vmatmul.f32.gmra.mxu0 %v97
  %v209 = vpop.f32.mrf.mxu0
  %v210 = vadd.f32 0.0, %v209
  %211 = vmatmul.f32.gmra.mxu0 %v100
  %v212 = vpop.f32.mrf.mxu0
  %v213 = vadd.f32 0.0, %v212
  %214 = vmatmul.f32.gmra.mxu0 %v103
  %v215 = vpop.f32.mrf.mxu0
  %v216 = vadd.f32 0.0, %v215
  %217 = vmatmul.f32.gmra.mxu0 %v106
  %v218 = vpop.f32.mrf.mxu0
  %v219 = vadd.f32 0.0, %v218
  %220 = vmatmul.f32.gmra.mxu0 %v109
  %v221 = vpop.f32.mrf.mxu0
  %v222 = vadd.f32 0.0, %v221
  %223 = vmatmul.f32.gmra.mxu0 %v112
  %v224 = vpop.f32.mrf.mxu0
  %v225 = vadd.f32 0.0, %v224
  %226 = vmatmul.f32.gmra.mxu0 %v115
  %v227 = vpop.f32.mrf.mxu0
  %v228 = vadd.f32 0.0, %v227
  %229 = vmatmul.f32.gmra.mxu0 %v118
  %v230 = vpop.f32.mrf.mxu0
  %v231 = vadd.f32 0.0, %v230
  %232 = vmatmul.f32.gmra.mxu0 %v121
  %v233 = vpop.f32.mrf.mxu0
  %v234 = vadd.f32 0.0, %v233
  %235 = vmatmul.f32.gmra.mxu0 %v124
  %v236 = vpop.f32.mrf.mxu0
  %v237 = vadd.f32 0.0, %v236
  %238 = vmatmul.f32.gmra.mxu0 %v127
  %v239 = vpop.f32.mrf.mxu0
  %v240 = vadd.f32 0.0, %v239
  %241 = vmatmul.f32.gmra.mxu0 %v130
  %v242 = vpop.f32.mrf.mxu0
  %v243 = vadd.f32 0.0, %v242
  %244 = vmatmul.f32.gmra.mxu0 %v133
  %v245 = vpop.f32.mrf.mxu0
  %v246 = vadd.f32 0.0, %v245
  %247 = vmatmul.f32.gmra.mxu0 %v136
  %v248 = vpop.f32.mrf.mxu0
  %v249 = vadd.f32 0.0, %v248
  %250 = vmatmul.f32.gmra.mxu0 %v139
  %v251 = vpop.f32.mrf.mxu0
  %v252 = vadd.f32 0.0, %v251
  %253 = vdwg.mxu0
  %v254 = vld [vmem:[%s2] sm:$0xff]
  %v255 = vld [vmem:[%s2 + $0x8] sm:$0xff]
  %v256 = vld [vmem:[%s2 + $0x10] sm:$0xff]
  %v257 = vld [vmem:[%s2 + $0x18] sm:$0xff]
  %v258 = vld [vmem:[%s2 + $0x20] sm:$0xff]
  %v259 = vld [vmem:[%s2 + $0x28] sm:$0xff]
  %v260 = vld [vmem:[%s2 + $0x30] sm:$0xff]
  %v261 = vld [vmem:[%s2 + $0x38] sm:$0xff]
  %v262 = vld [vmem:[%s2 + $0x40] sm:$0xff]
  %v263 = vld [vmem:[%s2 + $0x48] sm:$0xff]
  %v264 = vld [vmem:[%s2 + $0x50] sm:$0xff]
  %v265 = vld [vmem:[%s2 + $0x58] sm:$0xff]
  %v266 = vld [vmem:[%s2 + $0x60] sm:$0xff]
  %v267 = vld [vmem:[%s2 + $0x68] sm:$0xff]
  %v268 = vld [vmem:[%s2 + $0x70] sm:$0xff]
  %v269 = vld [vmem:[%s2 + $0x78] sm:$0xff]
  %271 = vset.pattern.permute.xlu0 0
  %272 = vperm.xlu0 %271, %v254
  %v273 = vpop.permute.xlu0 %272
  %276 = vset.pattern.permute.xlu0 0
  %277 = vperm.xlu0 %276, %v255
  %v278 = vpop.permute.xlu0 %277
  %281 = vset.pattern.permute.xlu0 0
  %282 = vperm.xlu0 %281, %v256
  %v283 = vpop.permute.xlu0 %282
  %286 = vset.pattern.permute.xlu0 0
  %287 = vperm.xlu0 %286, %v257
  %v288 = vpop.permute.xlu0 %287
  %291 = vset.pattern.permute.xlu0 0
  %292 = vperm.xlu0 %291, %v258
  %v293 = vpop.permute.xlu0 %292
  %296 = vset.pattern.permute.xlu0 0
  %297 = vperm.xlu0 %296, %v259
  %v298 = vpop.permute.xlu0 %297
  %301 = vset.pattern.permute.xlu0 0
  %302 = vperm.xlu0 %301, %v260
  %v303 = vpop.permute.xlu0 %302
  %306 = vset.pattern.permute.xlu0 0
  %307 = vperm.xlu0 %306, %v261
  %v308 = vpop.permute.xlu0 %307
  %311 = vset.pattern.permute.xlu0 0
  %312 = vperm.xlu0 %311, %v262
  %v313 = vpop.permute.xlu0 %312
  %316 = vset.pattern.permute.xlu0 0
  %317 = vperm.xlu0 %316, %v263
  %v318 = vpop.permute.xlu0 %317
  %321 = vset.pattern.permute.xlu0 0
  %322 = vperm.xlu0 %321, %v264
  %v323 = vpop.permute.xlu0 %322
  %326 = vset.pattern.permute.xlu0 0
  %327 = vperm.xlu0 %326, %v265
  %v328 = vpop.permute.xlu0 %327
  %331 = vset.pattern.permute.xlu0 0
  %332 = vperm.xlu0 %331, %v266
  %v333 = vpop.permute.xlu0 %332
  %336 = vset.pattern.permute.xlu0 0
  %337 = vperm.xlu0 %336, %v267
  %v338 = vpop.permute.xlu0 %337
  %341 = vset.pattern.permute.xlu0 0
  %342 = vperm.xlu0 %341, %v268
  %v343 = vpop.permute.xlu0 %342
  %346 = vset.pattern.permute.xlu0 0
  %347 = vperm.xlu0 %346, %v269
  %v348 = vpop.permute.xlu0 %347
  %v350 = vsub.f32 %v207, %v273
  %v351 = vsub.f32 %v210, %v278
  %v352 = vsub.f32 %v213, %v283
  %v353 = vsub.f32 %v216, %v288
  %v354 = vsub.f32 %v219, %v293
  %v355 = vsub.f32 %v222, %v298
  %v356 = vsub.f32 %v225, %v303
  %v357 = vsub.f32 %v228, %v308
  %v358 = vsub.f32 %v231, %v313
  %v359 = vsub.f32 %v234, %v318
  %v360 = vsub.f32 %v237, %v323
  %v361 = vsub.f32 %v240, %v328
  %v362 = vsub.f32 %v243, %v333
  %v363 = vsub.f32 %v246, %v338
  %v364 = vsub.f32 %v249, %v343
  %v365 = vsub.f32 %v252, %v348
  %v366 = vld [vmem:[%s3] sm:$0x1]
  %v368 = vperm.slane %v366, 0
  %v370 = vsub.f32 %v350, %v368
  %v371 = vsub.f32 %v351, %v368
  %v372 = vsub.f32 %v352, %v368
  %v373 = vsub.f32 %v353, %v368
  %v374 = vsub.f32 %v354, %v368
  %v375 = vsub.f32 %v355, %v368
  %v376 = vsub.f32 %v356, %v368
  %v377 = vsub.f32 %v357, %v368
  %v378 = vsub.f32 %v358, %v368
  %v379 = vsub.f32 %v359, %v368
  %v380 = vsub.f32 %v360, %v368
  %v381 = vsub.f32 %v361, %v368
  %v382 = vsub.f32 %v362, %v368
  %v383 = vsub.f32 %v363, %v368
  %v384 = vsub.f32 %v364, %v368
  %v385 = vsub.f32 %v365, %v368
  %v386 = vmin.f32 %v370, 0.0
  %v387 = vmin.f32 %v371, 0.0
  %v388 = vmin.f32 %v372, 0.0
  %v389 = vmin.f32 %v373, 0.0
  %v390 = vmin.f32 %v374, 0.0
  %v391 = vmin.f32 %v375, 0.0
  %v392 = vmin.f32 %v376, 0.0
  %v393 = vmin.f32 %v377, 0.0
  %v394 = vmin.f32 %v378, 0.0
  %v395 = vmin.f32 %v379, 0.0
  %v396 = vmin.f32 %v380, 0.0
  %v397 = vmin.f32 %v381, 0.0
  %v398 = vmin.f32 %v382, 0.0
  %v399 = vmin.f32 %v383, 0.0
  %v400 = vmin.f32 %v384, 0.0
  %v401 = vmin.f32 %v385, 0.0
  %v402 = vmul.f32 %v386, 1.442695
  %v403 = vpow.pop %v402
  %v404 = vmul.f32 %v387, 1.442695
  %v405 = vpow.pop %v404
  %v406 = vmul.f32 %v388, 1.442695
  %v407 = vpow.pop %v406
  %v408 = vmul.f32 %v389, 1.442695
  %v409 = vpow.pop %v408
  %v410 = vmul.f32 %v390, 1.442695
  %v411 = vpow.pop %v410
  %v412 = vmul.f32 %v391, 1.442695
  %v413 = vpow.pop %v412
  %v414 = vmul.f32 %v392, 1.442695
  %v415 = vpow.pop %v414
  %v416 = vmul.f32 %v393, 1.442695
  %v417 = vpow.pop %v416
  %v418 = vmul.f32 %v394, 1.442695
  %v419 = vpow.pop %v418
  %v420 = vmul.f32 %v395, 1.442695
  %v421 = vpow.pop %v420
  %v422 = vmul.f32 %v396, 1.442695
  %v423 = vpow.pop %v422
  %v424 = vmul.f32 %v397, 1.442695
  %v425 = vpow.pop %v424
  %v426 = vmul.f32 %v398, 1.442695
  %v427 = vpow.pop %v426
  %v428 = vmul.f32 %v399, 1.442695
  %v429 = vpow.pop %v428
  %v430 = vmul.f32 %v400, 1.442695
  %v431 = vpow.pop %v430
  %v432 = vmul.f32 %v401, 1.442695
  %v433 = vpow.pop %v432
  %v434 = vld [vmem:[%s4] sm:$0xff]
  %v435 = vld [vmem:[%s4 + $0x8] sm:$0xff]
  %v436 = vld [vmem:[%s4 + $0x10] sm:$0xff]
  %v437 = vld [vmem:[%s4 + $0x18] sm:$0xff]
  %v438 = vld [vmem:[%s4 + $0x20] sm:$0xff]
  %v439 = vld [vmem:[%s4 + $0x28] sm:$0xff]
  %v440 = vld [vmem:[%s4 + $0x30] sm:$0xff]
  %v441 = vld [vmem:[%s4 + $0x38] sm:$0xff]
  %v442 = vld [vmem:[%s4 + $0x40] sm:$0xff]
  %v443 = vld [vmem:[%s4 + $0x48] sm:$0xff]
  %v444 = vld [vmem:[%s4 + $0x50] sm:$0xff]
  %v445 = vld [vmem:[%s4 + $0x58] sm:$0xff]
  %v446 = vld [vmem:[%s4 + $0x60] sm:$0xff]
  %v447 = vld [vmem:[%s4 + $0x68] sm:$0xff]
  %v448 = vld [vmem:[%s4 + $0x70] sm:$0xff]
  %v449 = vld [vmem:[%s4 + $0x78] sm:$0xff]
  %v450 = vld [vmem:[%s5] sm:$0x1]
  %451 = vset.pattern.permute.xlu0 0
  %452 = vperm.xlu0 %451, %v434
  %v453 = vpop.permute.xlu0 %452
  %454 = vset.pattern.permute.xlu0 0
  %455 = vperm.xlu0 %454, %v435
  %v456 = vpop.permute.xlu0 %455
  %457 = vset.pattern.permute.xlu0 0
  %458 = vperm.xlu0 %457, %v436
  %v459 = vpop.permute.xlu0 %458
  %460 = vset.pattern.permute.xlu0 0
  %461 = vperm.xlu0 %460, %v437
  %v462 = vpop.permute.xlu0 %461
  %463 = vset.pattern.permute.xlu0 0
  %464 = vperm.xlu0 %463, %v438
  %v465 = vpop.permute.xlu0 %464
  %466 = vset.pattern.permute.xlu0 0
  %467 = vperm.xlu0 %466, %v439
  %v468 = vpop.permute.xlu0 %467
  %469 = vset.pattern.permute.xlu0 0
  %470 = vperm.xlu0 %469, %v440
  %v471 = vpop.permute.xlu0 %470
  %472 = vset.pattern.permute.xlu0 0
  %473 = vperm.xlu0 %472, %v441
  %v474 = vpop.permute.xlu0 %473
  %475 = vset.pattern.permute.xlu0 0
  %476 = vperm.xlu0 %475, %v442
  %v477 = vpop.permute.xlu0 %476
  %478 = vset.pattern.permute.xlu0 0
  %479 = vperm.xlu0 %478, %v443
  %v480 = vpop.permute.xlu0 %479
  %481 = vset.pattern.permute.xlu0 0
  %482 = vperm.xlu0 %481, %v444
  %v483 = vpop.permute.xlu0 %482
  %484 = vset.pattern.permute.xlu0 0
  %485 = vperm.xlu0 %484, %v445
  %v486 = vpop.permute.xlu0 %485
  %487 = vset.pattern.permute.xlu0 0
  %488 = vperm.xlu0 %487, %v446
  %v489 = vpop.permute.xlu0 %488
  %490 = vset.pattern.permute.xlu0 0
  %491 = vperm.xlu0 %490, %v447
  %v492 = vpop.permute.xlu0 %491
  %493 = vset.pattern.permute.xlu0 0
  %494 = vperm.xlu0 %493, %v448
  %v495 = vpop.permute.xlu0 %494
  %496 = vset.pattern.permute.xlu0 0
  %497 = vperm.xlu0 %496, %v449
  %v498 = vpop.permute.xlu0 %497
  %v499 = vperm.slane %v450, 0
  %vm500 = vcmp.eq.s32.totalorder %v453, %v499
  %vm501 = vcmp.eq.s32.totalorder %v456, %v499
  %vm502 = vcmp.eq.s32.totalorder %v459, %v499
  %vm503 = vcmp.eq.s32.totalorder %v462, %v499
  %vm504 = vcmp.eq.s32.totalorder %v465, %v499
  %vm505 = vcmp.eq.s32.totalorder %v468, %v499
  %vm506 = vcmp.eq.s32.totalorder %v471, %v499
  %vm507 = vcmp.eq.s32.totalorder %v474, %v499
  %vm508 = vcmp.eq.s32.totalorder %v477, %v499
  %vm509 = vcmp.eq.s32.totalorder %v480, %v499
  %vm510 = vcmp.eq.s32.totalorder %v483, %v499
  %vm511 = vcmp.eq.s32.totalorder %v486, %v499
  %vm512 = vcmp.eq.s32.totalorder %v489, %v499
  %vm513 = vcmp.eq.s32.totalorder %v492, %v499
  %vm514 = vcmp.eq.s32.totalorder %v495, %v499
  %vm515 = vcmp.eq.s32.totalorder %v498, %v499
  %p516 = scmp.eq.s32.totalorder 0, 0
  // Predicated region
  $region30: #{tpu_custom_call.1} parent=0 // pred_check
    %p517 = pneg %p516
  $region31: #{tpu_custom_call.1} parent=0 // pred_check_branch
    %519 = sbr.rel (%p517) target = $region33
  $region32: #{tpu_custom_call.1} parent=0 // pred_region
    %v520 = vlaneseq
    %v521 = vshrl.u32 %v520, 7
    %v522 = vadd.s32 %v521, 8
    %v523 = vadd.s32 %v521, 16
    %v524 = vadd.s32 %v521, 24
    %v525 = vadd.s32 %v521, 32
    %v526 = vadd.s32 %v521, 40
    %v527 = vadd.s32 %v521, 48
    %v528 = vadd.s32 %v521, 56
    %v529 = vadd.s32 %v521, 64
    %v530 = vadd.s32 %v521, 72
    %v531 = vadd.s32 %v521, 80
    %v532 = vadd.s32 %v521, 88
    %v533 = vadd.s32 %v521, 96
    %v534 = vadd.s32 %v521, 104
    %v535 = vadd.s32 %v521, 112
    %v536 = vadd.s32 %v521, 120
    %v537 = vlaneseq
    %v538 = vand.u32 %v537, 127
    %vm539 = vcmp.eq.s32.totalorder %v521, %v538
    %vm540 = vcmp.eq.s32.totalorder %v522, %v538
    %vm541 = vcmp.eq.s32.totalorder %v523, %v538
    %vm542 = vcmp.eq.s32.totalorder %v524, %v538
    %vm543 = vcmp.eq.s32.totalorder %v525, %v538
    %vm544 = vcmp.eq.s32.totalorder %v526, %v538
    %vm545 = vcmp.eq.s32.totalorder %v527, %v538
    %vm546 = vcmp.eq.s32.totalorder %v528, %v538
    %vm547 = vcmp.eq.s32.totalorder %v529, %v538
    %vm548 = vcmp.eq.s32.totalorder %v530, %v538
    %vm549 = vcmp.eq.s32.totalorder %v531, %v538
    %vm550 = vcmp.eq.s32.totalorder %v532, %v538
    %vm551 = vcmp.eq.s32.totalorder %v533, %v538
    %vm552 = vcmp.eq.s32.totalorder %v534, %v538
    %vm553 = vcmp.eq.s32.totalorder %v535, %v538
    %vm554 = vcmp.eq.s32.totalorder %v536, %v538
    %v555 = vsel %vm539, 0.0, %v403
    %v556 = vsel %vm540, 0.0, %v405
    %v557 = vsel %vm541, 0.0, %v407
    %v558 = vsel %vm542, 0.0, %v409
    %v559 = vsel %vm543, 0.0, %v411
    %v560 = vsel %vm544, 0.0, %v413
    %v561 = vsel %vm545, 0.0, %v415
    %v562 = vsel %vm546, 0.0, %v417
    %v563 = vsel %vm547, 0.0, %v419
    %v564 = vsel %vm548, 0.0, %v421
    %v565 = vsel %vm549, 0.0, %v423
    %v566 = vsel %vm550, 0.0, %v425
    %v567 = vsel %vm551, 0.0, %v427
    %v568 = vsel %vm552, 0.0, %v429
    %v569 = vsel %vm553, 0.0, %v431
    %v570 = vsel %vm554, 0.0, %v433
    %v571 = vld [vmem:[#allocation2] sm:$0xff]
    %v572 = vld [vmem:[#allocation2 + $0x8] sm:$0xff]
    %v573 = vld [vmem:[#allocation2 + $0x10] sm:$0xff]
    %v574 = vld [vmem:[#allocation2 + $0x18] sm:$0xff]
    %v575 = vld [vmem:[#allocation2 + $0x20] sm:$0xff]
    %v576 = vld [vmem:[#allocation2 + $0x28] sm:$0xff]
    %v577 = vld [vmem:[#allocation2 + $0x30] sm:$0xff]
    %v578 = vld [vmem:[#allocation2 + $0x38] sm:$0xff]
    %v579 = vld [vmem:[#allocation2 + $0x40] sm:$0xff]
    %v580 = vld [vmem:[#allocation2 + $0x48] sm:$0xff]
    %v581 = vld [vmem:[#allocation2 + $0x50] sm:$0xff]
    %v582 = vld [vmem:[#allocation2 + $0x58] sm:$0xff]
    %v583 = vld [vmem:[#allocation2 + $0x60] sm:$0xff]
    %v584 = vld [vmem:[#allocation2 + $0x68] sm:$0xff]
    %v585 = vld [vmem:[#allocation2 + $0x70] sm:$0xff]
    %v586 = vld [vmem:[#allocation2 + $0x78] sm:$0xff]
    %v587 = vsel %vm500, %v555, 0.0
    %v588 = vsel %vm501, %v556, 0.0
    %v589 = vsel %vm502, %v557, 0.0
    %v590 = vsel %vm503, %v558, 0.0
    %v591 = vsel %vm504, %v559, 0.0
    %v592 = vsel %vm505, %v560, 0.0
    %v593 = vsel %vm506, %v561, 0.0
    %v594 = vsel %vm507, %v562, 0.0
    %v595 = vsel %vm508, %v563, 0.0
    %v596 = vsel %vm509, %v564, 0.0
    %v597 = vsel %vm510, %v565, 0.0
    %v598 = vsel %vm511, %v566, 0.0
    %v599 = vsel %vm512, %v567, 0.0
    %v600 = vsel %vm513, %v568, 0.0
    %v601 = vsel %vm514, %v569, 0.0
    %v602 = vsel %vm515, %v570, 0.0
    %603 = vadd.xlane.f32.xlu0 %v587
    %v604 = vpop.xlane.xlu0 %603
    %605 = vadd.xlane.f32.xlu0 %v588
    %v606 = vpop.xlane.xlu0 %605
    %607 = vadd.xlane.f32.xlu0 %v589
    %v608 = vpop.xlane.xlu0 %607
    %609 = vadd.xlane.f32.xlu0 %v590
    %v610 = vpop.xlane.xlu0 %609
    %611 = vadd.xlane.f32.xlu0 %v591
    %v612 = vpop.xlane.xlu0 %611
    %613 = vadd.xlane.f32.xlu0 %v592
    %v614 = vpop.xlane.xlu0 %613
    %615 = vadd.xlane.f32.xlu0 %v593
    %v616 = vpop.xlane.xlu0 %615
    %617 = vadd.xlane.f32.xlu0 %v594
    %v618 = vpop.xlane.xlu0 %617
    %619 = vadd.xlane.f32.xlu0 %v595
    %v620 = vpop.xlane.xlu0 %619
    %621 = vadd.xlane.f32.xlu0 %v596
    %v622 = vpop.xlane.xlu0 %621
    %623 = vadd.xlane.f32.xlu0 %v597
    %v624 = vpop.xlane.xlu0 %623
    %625 = vadd.xlane.f32.xlu0 %v598
    %v626 = vpop.xlane.xlu0 %625
    %627 = vadd.xlane.f32.xlu0 %v599
    %v628 = vpop.xlane.xlu0 %627
    %629 = vadd.xlane.f32.xlu0 %v600
    %v630 = vpop.xlane.xlu0 %629
    %631 = vadd.xlane.f32.xlu0 %v601
    %v632 = vpop.xlane.xlu0 %631
    %633 = vadd.xlane.f32.xlu0 %v602
    %v634 = vpop.xlane.xlu0 %633
    %v635 = vadd.f32 %v571, %v604
    %v636 = vadd.f32 %v572, %v606
    %v637 = vadd.f32 %v573, %v608
    %v638 = vadd.f32 %v574, %v610
    %v639 = vadd.f32 %v575, %v612
    %v640 = vadd.f32 %v576, %v614
    %v641 = vadd.f32 %v577, %v616
    %v642 = vadd.f32 %v578, %v618
    %v643 = vadd.f32 %v579, %v620
    %v644 = vadd.f32 %v580, %v622
    %v645 = vadd.f32 %v581, %v624
    %v646 = vadd.f32 %v582, %v626
    %v647 = vadd.f32 %v583, %v628
    %v648 = vadd.f32 %v584, %v630
    %v649 = vadd.f32 %v585, %v632
    %v650 = vadd.f32 %v586, %v634
    %vm651 = vcmask 7168
    %652 = vst.msk [vmem:[#allocation2] sm:$0xff] %vm651, %v635
    %653 = vst.msk [vmem:[#allocation2 + $0x8] sm:$0xff] %vm651, %v636
    %654 = vst.msk [vmem:[#allocation2 + $0x10] sm:$0xff] %vm651, %v637
    %655 = vst.msk [vmem:[#allocation2 + $0x18] sm:$0xff] %vm651, %v638
    %656 = vst.msk [vmem:[#allocation2 + $0x20] sm:$0xff] %vm651, %v639
    %657 = vst.msk [vmem:[#allocation2 + $0x28] sm:$0xff] %vm651, %v640
    %658 = vst.msk [vmem:[#allocation2 + $0x30] sm:$0xff] %vm651, %v641
    %659 = vst.msk [vmem:[#allocation2 + $0x38] sm:$0xff] %vm651, %v642
    %660 = vst.msk [vmem:[#allocation2 + $0x40] sm:$0xff] %vm651, %v643
    %661 = vst.msk [vmem:[#allocation2 + $0x48] sm:$0xff] %vm651, %v644
    %662 = vst.msk [vmem:[#allocation2 + $0x50] sm:$0xff] %vm651, %v645
    %663 = vst.msk [vmem:[#allocation2 + $0x58] sm:$0xff] %vm651, %v646
    %664 = vst.msk [vmem:[#allocation2 + $0x60] sm:$0xff] %vm651, %v647
    %665 = vst.msk [vmem:[#allocation2 + $0x68] sm:$0xff] %vm651, %v648
    %666 = vst.msk [vmem:[#allocation2 + $0x70] sm:$0xff] %vm651, %v649
    %667 = vst.msk [vmem:[#allocation2 + $0x78] sm:$0xff] %vm651, %v650
    %v668 = vld [vmem:[#allocation3] sm:$0xff]
    %v669 = vld [vmem:[#allocation3 + $0x8] sm:$0xff]
    %v670 = vld [vmem:[#allocation3 + $0x10] sm:$0xff]
    %v671 = vld [vmem:[#allocation3 + $0x18] sm:$0xff]
    %v672 = vld [vmem:[#allocation3 + $0x20] sm:$0xff]
    %v673 = vld [vmem:[#allocation3 + $0x28] sm:$0xff]
    %v674 = vld [vmem:[#allocation3 + $0x30] sm:$0xff]
    %v675 = vld [vmem:[#allocation3 + $0x38] sm:$0xff]
    %v676 = vld [vmem:[#allocation3 + $0x40] sm:$0xff]
    %v677 = vld [vmem:[#allocation3 + $0x48] sm:$0xff]
    %v678 = vld [vmem:[#allocation3 + $0x50] sm:$0xff]
    %v679 = vld [vmem:[#allocation3 + $0x58] sm:$0xff]
    %v680 = vld [vmem:[#allocation3 + $0x60] sm:$0xff]
    %v681 = vld [vmem:[#allocation3 + $0x68] sm:$0xff]
    %v682 = vld [vmem:[#allocation3 + $0x70] sm:$0xff]
    %v683 = vld [vmem:[#allocation3 + $0x78] sm:$0xff]
    %684 = vadd.xlane.f32.xlu0 %v555
    %v685 = vpop.xlane.xlu0 %684
    %686 = vadd.xlane.f32.xlu0 %v556
    %v687 = vpop.xlane.xlu0 %686
    %688 = vadd.xlane.f32.xlu0 %v557
    %v689 = vpop.xlane.xlu0 %688
    %690 = vadd.xlane.f32.xlu0 %v558
    %v691 = vpop.xlane.xlu0 %690
    %692 = vadd.xlane.f32.xlu0 %v559
    %v693 = vpop.xlane.xlu0 %692
    %694 = vadd.xlane.f32.xlu0 %v560
    %v695 = vpop.xlane.xlu0 %694
    %696 = vadd.xlane.f32.xlu0 %v561
    %v697 = vpop.xlane.xlu0 %696
    %698 = vadd.xlane.f32.xlu0 %v562
    %v699 = vpop.xlane.xlu0 %698
    %700 = vadd.xlane.f32.xlu0 %v563
    %v701 = vpop.xlane.xlu0 %700
    %702 = vadd.xlane.f32.xlu0 %v564
    %v703 = vpop.xlane.xlu0 %702
    %704 = vadd.xlane.f32.xlu0 %v565
    %v705 = vpop.xlane.xlu0 %704
    %706 = vadd.xlane.f32.xlu0 %v566
    %v707 = vpop.xlane.xlu0 %706
    %708 = vadd.xlane.f32.xlu0 %v567
    %v709 = vpop.xlane.xlu0 %708
    %710 = vadd.xlane.f32.xlu0 %v568
    %v711 = vpop.xlane.xlu0 %710
    %712 = vadd.xlane.f32.xlu0 %v569
    %v713 = vpop.xlane.xlu0 %712
    %714 = vadd.xlane.f32.xlu0 %v570
    %v715 = vpop.xlane.xlu0 %714
    %v716 = vadd.f32 %v668, %v685
    %v717 = vadd.f32 %v669, %v687
    %v718 = vadd.f32 %v670, %v689
    %v719 = vadd.f32 %v671, %v691
    %v720 = vadd.f32 %v672, %v693
    %v721 = vadd.f32 %v673, %v695
    %v722 = vadd.f32 %v674, %v697
    %v723 = vadd.f32 %v675, %v699
    %v724 = vadd.f32 %v676, %v701
    %v725 = vadd.f32 %v677, %v703
    %v726 = vadd.f32 %v678, %v705
    %v727 = vadd.f32 %v679, %v707
    %v728 = vadd.f32 %v680, %v709
    %v729 = vadd.f32 %v681, %v711
    %v730 = vadd.f32 %v682, %v713
    %v731 = vadd.f32 %v683, %v715
    %732 = vst.msk [vmem:[#allocation3] sm:$0xff] %vm651, %v716
    %733 = vst.msk [vmem:[#allocation3 + $0x8] sm:$0xff] %vm651, %v717
    %734 = vst.msk [vmem:[#allocation3 + $0x10] sm:$0xff] %vm651, %v718
    %735 = vst.msk [vmem:[#allocation3 + $0x18] sm:$0xff] %vm651, %v719
    %736 = vst.msk [vmem:[#allocation3 + $0x20] sm:$0xff] %vm651, %v720
    %737 = vst.msk [vmem:[#allocation3 + $0x28] sm:$0xff] %vm651, %v721
    %738 = vst.msk [vmem:[#allocation3 + $0x30] sm:$0xff] %vm651, %v722
    %739 = vst.msk [vmem:[#allocation3 + $0x38] sm:$0xff] %vm651, %v723
    %740 = vst.msk [vmem:[#allocation3 + $0x40] sm:$0xff] %vm651, %v724
    %741 = vst.msk [vmem:[#allocation3 + $0x48] sm:$0xff] %vm651, %v725
    %742 = vst.msk [vmem:[#allocation3 + $0x50] sm:$0xff] %vm651, %v726
    %743 = vst.msk [vmem:[#allocation3 + $0x58] sm:$0xff] %vm651, %v727
    %744 = vst.msk [vmem:[#allocation3 + $0x60] sm:$0xff] %vm651, %v728
    %745 = vst.msk [vmem:[#allocation3 + $0x68] sm:$0xff] %vm651, %v729
    %746 = vst.msk [vmem:[#allocation3 + $0x70] sm:$0xff] %vm651, %v730
    %747 = vst.msk [vmem:[#allocation3 + $0x78] sm:$0xff] %vm651, %v731
  $region33: #{tpu_custom_call.1} parent=0 // pred_fallthru
    _
  %p748 = scmp.ne.s32.totalorder 0, 0
  // Predicated region
  $region34: #{tpu_custom_call.1} parent=0 // pred_check
    %p749 = pneg %p748
  $region35: #{tpu_custom_call.1} parent=0 // pred_check_branch
    %751 = sbr.rel (%p749) target = $region37
  $region36: #{tpu_custom_call.1} parent=0 // pred_region
    %v752 = vld [vmem:[#allocation2] sm:$0xff]
    %v753 = vld [vmem:[#allocation2 + $0x8] sm:$0xff]
    %v754 = vld [vmem:[#allocation2 + $0x10] sm:$0xff]
    %v755 = vld [vmem:[#allocation2 + $0x18] sm:$0xff]
    %v756 = vld [vmem:[#allocation2 + $0x20] sm:$0xff]
    %v757 = vld [vmem:[#allocation2 + $0x28] sm:$0xff]
    %v758 = vld [vmem:[#allocation2 + $0x30] sm:$0xff]
    %v759 = vld [vmem:[#allocation2 + $0x38] sm:$0xff]
    %v760 = vld [vmem:[#allocation2 + $0x40] sm:$0xff]
    %v761 = vld [vmem:[#allocation2 + $0x48] sm:$0xff]
    %v762 = vld [vmem:[#allocation2 + $0x50] sm:$0xff]
    %v763 = vld [vmem:[#allocation2 + $0x58] sm:$0xff]
    %v764 = vld [vmem:[#allocation2 + $0x60] sm:$0xff]
    %v765 = vld [vmem:[#allocation2 + $0x68] sm:$0xff]
    %v766 = vld [vmem:[#allocation2 + $0x70] sm:$0xff]
    %v767 = vld [vmem:[#allocation2 + $0x78] sm:$0xff]
    %v768 = vsel %vm500, %v403, 0.0
    %v769 = vsel %vm501, %v405, 0.0
    %v770 = vsel %vm502, %v407, 0.0
    %v771 = vsel %vm503, %v409, 0.0
    %v772 = vsel %vm504, %v411, 0.0
    %v773 = vsel %vm505, %v413, 0.0
    %v774 = vsel %vm506, %v415, 0.0
    %v775 = vsel %vm507, %v417, 0.0
    %v776 = vsel %vm508, %v419, 0.0
    %v777 = vsel %vm509, %v421, 0.0
    %v778 = vsel %vm510, %v423, 0.0
    %v779 = vsel %vm511, %v425, 0.0
    %v780 = vsel %vm512, %v427, 0.0
    %v781 = vsel %vm513, %v429, 0.0
    %v782 = vsel %vm514, %v431, 0.0
    %v783 = vsel %vm515, %v433, 0.0
    %784 = vadd.xlane.f32.xlu0 %v768
    %v785 = vpop.xlane.xlu0 %784
    %786 = vadd.xlane.f32.xlu0 %v769
    %v787 = vpop.xlane.xlu0 %786
    %788 = vadd.xlane.f32.xlu0 %v770
    %v789 = vpop.xlane.xlu0 %788
    %790 = vadd.xlane.f32.xlu0 %v771
    %v791 = vpop.xlane.xlu0 %790
    %792 = vadd.xlane.f32.xlu0 %v772
    %v793 = vpop.xlane.xlu0 %792
    %794 = vadd.xlane.f32.xlu0 %v773
    %v795 = vpop.xlane.xlu0 %794
    %796 = vadd.xlane.f32.xlu0 %v774
    %v797 = vpop.xlane.xlu0 %796
    %798 = vadd.xlane.f32.xlu0 %v775
    %v799 = vpop.xlane.xlu0 %798
    %800 = vadd.xlane.f32.xlu0 %v776
    %v801 = vpop.xlane.xlu0 %800
    %802 = vadd.xlane.f32.xlu0 %v777
    %v803 = vpop.xlane.xlu0 %802
    %804 = vadd.xlane.f32.xlu0 %v778
    %v805 = vpop.xlane.xlu0 %804
    %806 = vadd.xlane.f32.xlu0 %v779
    %v807 = vpop.xlane.xlu0 %806
    %808 = vadd.xlane.f32.xlu0 %v780
    %v809 = vpop.xlane.xlu0 %808
    %810 = vadd.xlane.f32.xlu0 %v781
    %v811 = vpop.xlane.xlu0 %810
    %812 = vadd.xlane.f32.xlu0 %v782
    %v813 = vpop.xlane.xlu0 %812
    %814 = vadd.xlane.f32.xlu0 %v783
    %v815 = vpop.xlane.xlu0 %814
    %v816 = vadd.f32 %v752, %v785
    %v817 = vadd.f32 %v753, %v787
    %v818 = vadd.f32 %v754, %v789
    %v819 = vadd.f32 %v755, %v791
    %v820 = vadd.f32 %v756, %v793
    %v821 = vadd.f32 %v757, %v795
    %v822 = vadd.f32 %v758, %v797
    %v823 = vadd.f32 %v759, %v799
    %v824 = vadd.f32 %v760, %v801
    %v825 = vadd.f32 %v761, %v803
    %v826 = vadd.f32 %v762, %v805
    %v827 = vadd.f32 %v763, %v807
    %v828 = vadd.f32 %v764, %v809
    %v829 = vadd.f32 %v765, %v811
    %v830 = vadd.f32 %v766, %v813
    %v831 = vadd.f32 %v767, %v815
    %vm832 = vcmask 7168
    %833 = vst.msk [vmem:[#allocation2] sm:$0xff] %vm832, %v816
    %834 = vst.msk [vmem:[#allocation2 + $0x8] sm:$0xff] %vm832, %v817
    %835 = vst.msk [vmem:[#allocation2 + $0x10] sm:$0xff] %vm832, %v818
    %836 = vst.msk [vmem:[#allocation2 + $0x18] sm:$0xff] %vm832, %v819
    %837 = vst.msk [vmem:[#allocation2 + $0x20] sm:$0xff] %vm832, %v820
    %838 = vst.msk [vmem:[#allocation2 + $0x28] sm:$0xff] %vm832, %v821
    %839 = vst.msk [vmem:[#allocation2 + $0x30] sm:$0xff] %vm832, %v822
    %840 = vst.msk [vmem:[#allocation2 + $0x38] sm:$0xff] %vm832, %v823
    %841 = vst.msk [vmem:[#allocation2 + $0x40] sm:$0xff] %vm832, %v824
    %842 = vst.msk [vmem:[#allocation2 + $0x48] sm:$0xff] %vm832, %v825
    %843 = vst.msk [vmem:[#allocation2 + $0x50] sm:$0xff] %vm832, %v826
    %844 = vst.msk [vmem:[#allocation2 + $0x58] sm:$0xff] %vm832, %v827
    %845 = vst.msk [vmem:[#allocation2 + $0x60] sm:$0xff] %vm832, %v828
    %846 = vst.msk [vmem:[#allocation2 + $0x68] sm:$0xff] %vm832, %v829
    %847 = vst.msk [vmem:[#allocation2 + $0x70] sm:$0xff] %vm832, %v830
    %848 = vst.msk [vmem:[#allocation2 + $0x78] sm:$0xff] %vm832, %v831
    %v849 = vld [vmem:[#allocation3] sm:$0xff]
    %v850 = vld [vmem:[#allocation3 + $0x8] sm:$0xff]
    %v851 = vld [vmem:[#allocation3 + $0x10] sm:$0xff]
    %v852 = vld [vmem:[#allocation3 + $0x18] sm:$0xff]
    %v853 = vld [vmem:[#allocation3 + $0x20] sm:$0xff]
    %v854 = vld [vmem:[#allocation3 + $0x28] sm:$0xff]
    %v855 = vld [vmem:[#allocation3 + $0x30] sm:$0xff]
    %v856 = vld [vmem:[#allocation3 + $0x38] sm:$0xff]
    %v857 = vld [vmem:[#allocation3 + $0x40] sm:$0xff]
    %v858 = vld [vmem:[#allocation3 + $0x48] sm:$0xff]
    %v859 = vld [vmem:[#allocation3 + $0x50] sm:$0xff]
    %v860 = vld [vmem:[#allocation3 + $0x58] sm:$0xff]
    %v861 = vld [vmem:[#allocation3 + $0x60] sm:$0xff]
    %v862 = vld [vmem:[#allocation3 + $0x68] sm:$0xff]
    %v863 = vld [vmem:[#allocation3 + $0x70] sm:$0xff]
    %v864 = vld [vmem:[#allocation3 + $0x78] sm:$0xff]
    %865 = vadd.xlane.f32.xlu0 %v403
    %v866 = vpop.xlane.xlu0 %865
    %867 = vadd.xlane.f32.xlu0 %v405
    %v868 = vpop.xlane.xlu0 %867
    %869 = vadd.xlane.f32.xlu0 %v407
    %v870 = vpop.xlane.xlu0 %869
    %871 = vadd.xlane.f32.xlu0 %v409
    %v872 = vpop.xlane.xlu0 %871
    %873 = vadd.xlane.f32.xlu0 %v411
    %v874 = vpop.xlane.xlu0 %873
    %875 = vadd.xlane.f32.xlu0 %v413
    %v876 = vpop.xlane.xlu0 %875
    %877 = vadd.xlane.f32.xlu0 %v415
    %v878 = vpop.xlane.xlu0 %877
    %879 = vadd.xlane.f32.xlu0 %v417
    %v880 = vpop.xlane.xlu0 %879
    %881 = vadd.xlane.f32.xlu0 %v419
    %v882 = vpop.xlane.xlu0 %881
    %883 = vadd.xlane.f32.xlu0 %v421
    %v884 = vpop.xlane.xlu0 %883
    %885 = vadd.xlane.f32.xlu0 %v423
    %v886 = vpop.xlane.xlu0 %885
    %887 = vadd.xlane.f32.xlu0 %v425
    %v888 = vpop.xlane.xlu0 %887
    %889 = vadd.xlane.f32.xlu0 %v427
    %v890 = vpop.xlane.xlu0 %889
    %891 = vadd.xlane.f32.xlu0 %v429
    %v892 = vpop.xlane.xlu0 %891
    %893 = vadd.xlane.f32.xlu0 %v431
    %v894 = vpop.xlane.xlu0 %893
    %895 = vadd.xlane.f32.xlu0 %v433
    %v896 = vpop.xlane.xlu0 %895
    %v897 = vadd.f32 %v849, %v866
    %v898 = vadd.f32 %v850, %v868
    %v899 = vadd.f32 %v851, %v870
    %v900 = vadd.f32 %v852, %v872
    %v901 = vadd.f32 %v853, %v874
    %v902 = vadd.f32 %v854, %v876
    %v903 = vadd.f32 %v855, %v878
    %v904 = vadd.f32 %v856, %v880
    %v905 = vadd.f32 %v857, %v882
    %v906 = vadd.f32 %v858, %v884
    %v907 = vadd.f32 %v859, %v886
    %v908 = vadd.f32 %v860, %v888
    %v909 = vadd.f32 %v861, %v890
    %v910 = vadd.f32 %v862, %v892
    %v911 = vadd.f32 %v863, %v894
    %v912 = vadd.f32 %v864, %v896
    %913 = vst.msk [vmem:[#allocation3] sm:$0xff] %vm832, %v897
    %914 = vst.msk [vmem:[#allocation3 + $0x8] sm:$0xff] %vm832, %v898
    %915 = vst.msk [vmem:[#allocation3 + $0x10] sm:$0xff] %vm832, %v899
    %916 = vst.msk [vmem:[#allocation3 + $0x18] sm:$0xff] %vm832, %v900
    %917 = vst.msk [vmem:[#allocation3 + $0x20] sm:$0xff] %vm832, %v901
    %918 = vst.msk [vmem:[#allocation3 + $0x28] sm:$0xff] %vm832, %v902
    %919 = vst.msk [vmem:[#allocation3 + $0x30] sm:$0xff] %vm832, %v903
    %920 = vst.msk [vmem:[#allocation3 + $0x38] sm:$0xff] %vm832, %v904
    %921 = vst.msk [vmem:[#allocation3 + $0x40] sm:$0xff] %vm832, %v905
    %922 = vst.msk [vmem:[#allocation3 + $0x48] sm:$0xff] %vm832, %v906
    %923 = vst.msk [vmem:[#allocation3 + $0x50] sm:$0xff] %vm832, %v907
    %924 = vst.msk [vmem:[#allocation3 + $0x58] sm:$0xff] %vm832, %v908
    %925 = vst.msk [vmem:[#allocation3 + $0x60] sm:$0xff] %vm832, %v909
    %926 = vst.msk [vmem:[#allocation3 + $0x68] sm:$0xff] %vm832, %v910
    %927 = vst.msk [vmem:[#allocation3 + $0x70] sm:$0xff] %vm832, %v911
    %928 = vst.msk [vmem:[#allocation3 + $0x78] sm:$0xff] %vm832, %v912
  $region37: #{tpu_custom_call.1} parent=0 // pred_fallthru
    _
  // Predicated region
  $region38: #{tpu_custom_call.1} parent=0 // pred_check
    %p929 = pneg %p23
  $region39: #{tpu_custom_call.1} parent=0 // pred_check_branch
    %931 = sbr.rel (%p929) target = $region41
  $region40: #{tpu_custom_call.1} parent=0 // pred_region
    %v932 = vld [vmem:[#allocation3] sm:$0xff]
    %v933 = vld [vmem:[#allocation3 + $0x8] sm:$0xff]
    %v934 = vld [vmem:[#allocation3 + $0x10] sm:$0xff]
    %v935 = vld [vmem:[#allocation3 + $0x18] sm:$0xff]
    %v936 = vld [vmem:[#allocation3 + $0x20] sm:$0xff]
    %v937 = vld [vmem:[#allocation3 + $0x28] sm:$0xff]
    %v938 = vld [vmem:[#allocation3 + $0x30] sm:$0xff]
    %v939 = vld [vmem:[#allocation3 + $0x38] sm:$0xff]
    %v940 = vld [vmem:[#allocation3 + $0x40] sm:$0xff]
    %v941 = vld [vmem:[#allocation3 + $0x48] sm:$0xff]
    %v942 = vld [vmem:[#allocation3 + $0x50] sm:$0xff]
    %v943 = vld [vmem:[#allocation3 + $0x58] sm:$0xff]
    %v944 = vld [vmem:[#allocation3 + $0x60] sm:$0xff]
    %v945 = vld [vmem:[#allocation3 + $0x68] sm:$0xff]
    %v946 = vld [vmem:[#allocation3 + $0x70] sm:$0xff]
    %v947 = vld [vmem:[#allocation3 + $0x78] sm:$0xff]
    %v948 = vadd.f32 %v932, 1e-08
    %v949 = vadd.f32 %v933, 1e-08
    %v950 = vadd.f32 %v934, 1e-08
    %v951 = vadd.f32 %v935, 1e-08
    %v952 = vadd.f32 %v936, 1e-08
    %v953 = vadd.f32 %v937, 1e-08
    %v954 = vadd.f32 %v938, 1e-08
    %v955 = vadd.f32 %v939, 1e-08
    %v956 = vadd.f32 %v940, 1e-08
    %v957 = vadd.f32 %v941, 1e-08
    %v958 = vadd.f32 %v942, 1e-08
    %v959 = vadd.f32 %v943, 1e-08
    %v960 = vadd.f32 %v944, 1e-08
    %v961 = vadd.f32 %v945, 1e-08
    %v962 = vadd.f32 %v946, 1e-08
    %v963 = vadd.f32 %v947, 1e-08
    %v964 = vlog2.pop %v948
    %v965 = vmul.f32 %v964, 0.6931472
    %v966 = vlog2.pop %v949
    %v967 = vmul.f32 %v966, 0.6931472
    %v968 = vlog2.pop %v950
    %v969 = vmul.f32 %v968, 0.6931472
    %v970 = vlog2.pop %v951
    %v971 = vmul.f32 %v970, 0.6931472
    %v972 = vlog2.pop %v952
    %v973 = vmul.f32 %v972, 0.6931472
    %v974 = vlog2.pop %v953
    %v975 = vmul.f32 %v974, 0.6931472
    %v976 = vlog2.pop %v954
    %v977 = vmul.f32 %v976, 0.6931472
    %v978 = vlog2.pop %v955
    %v979 = vmul.f32 %v978, 0.6931472
    %v980 = vlog2.pop %v956
    %v981 = vmul.f32 %v980, 0.6931472
    %v982 = vlog2.pop %v957
    %v983 = vmul.f32 %v982, 0.6931472
    %v984 = vlog2.pop %v958
    %v985 = vmul.f32 %v984, 0.6931472
    %v986 = vlog2.pop %v959
    %v987 = vmul.f32 %v986, 0.6931472
    %v988 = vlog2.pop %v960
    %v989 = vmul.f32 %v988, 0.6931472
    %v990 = vlog2.pop %v961
    %v991 = vmul.f32 %v990, 0.6931472
    %v992 = vlog2.pop %v962
    %v993 = vmul.f32 %v992, 0.6931472
    %v994 = vlog2.pop %v963
    %v995 = vmul.f32 %v994, 0.6931472
    %v996 = vld [vmem:[#allocation2] sm:$0xff]
    %v997 = vld [vmem:[#allocation2 + $0x8] sm:$0xff]
    %v998 = vld [vmem:[#allocation2 + $0x10] sm:$0xff]
    %v999 = vld [vmem:[#allocation2 + $0x18] sm:$0xff]
    %v1000 = vld [vmem:[#allocation2 + $0x20] sm:$0xff]
    %v1001 = vld [vmem:[#allocation2 + $0x28] sm:$0xff]
    %v1002 = vld [vmem:[#allocation2 + $0x30] sm:$0xff]
    %v1003 = vld [vmem:[#allocation2 + $0x38] sm:$0xff]
    %v1004 = vld [vmem:[#allocation2 + $0x40] sm:$0xff]
    %v1005 = vld [vmem:[#allocation2 + $0x48] sm:$0xff]
    %v1006 = vld [vmem:[#allocation2 + $0x50] sm:$0xff]
    %v1007 = vld [vmem:[#allocation2 + $0x58] sm:$0xff]
    %v1008 = vld [vmem:[#allocation2 + $0x60] sm:$0xff]
    %v1009 = vld [vmem:[#allocation2 + $0x68] sm:$0xff]
    %v1010 = vld [vmem:[#allocation2 + $0x70] sm:$0xff]
    %v1011 = vld [vmem:[#allocation2 + $0x78] sm:$0xff]
    %v1012 = vadd.f32 %v996, 1e-08
    %v1013 = vadd.f32 %v997, 1e-08
    %v1014 = vadd.f32 %v998, 1e-08
    %v1015 = vadd.f32 %v999, 1e-08
    %v1016 = vadd.f32 %v1000, 1e-08
    %v1017 = vadd.f32 %v1001, 1e-08
    %v1018 = vadd.f32 %v1002, 1e-08
    %v1019 = vadd.f32 %v1003, 1e-08
    %v1020 = vadd.f32 %v1004, 1e-08
    %v1021 = vadd.f32 %v1005, 1e-08
    %v1022 = vadd.f32 %v1006, 1e-08
    %v1023 = vadd.f32 %v1007, 1e-08
    %v1024 = vadd.f32 %v1008, 1e-08
    %v1025 = vadd.f32 %v1009, 1e-08
    %v1026 = vadd.f32 %v1010, 1e-08
    %v1027 = vadd.f32 %v1011, 1e-08
    %v1028 = vlog2.pop %v1012
    %v1029 = vmul.f32 %v1028, 0.6931472
    %v1030 = vlog2.pop %v1013
    %v1031 = vmul.f32 %v1030, 0.6931472
    %v1032 = vlog2.pop %v1014
    %v1033 = vmul.f32 %v1032, 0.6931472
    %v1034 = vlog2.pop %v1015
    %v1035 = vmul.f32 %v1034, 0.6931472
    %v1036 = vlog2.pop %v1016
    %v1037 = vmul.f32 %v1036, 0.6931472
    %v1038 = vlog2.pop %v1017
    %v1039 = vmul.f32 %v1038, 0.6931472
    %v1040 = vlog2.pop %v1018
    %v1041 = vmul.f32 %v1040, 0.6931472
    %v1042 = vlog2.pop %v1019
    %v1043 = vmul.f32 %v1042, 0.6931472
    %v1044 = vlog2.pop %v1020
    %v1045 = vmul.f32 %v1044, 0.6931472
    %v1046 = vlog2.pop %v1021
    %v1047 = vmul.f32 %v1046, 0.6931472
    %v1048 = vlog2.pop %v1022
    %v1049 = vmul.f32 %v1048, 0.6931472
    %v1050 = vlog2.pop %v1023
    %v1051 = vmul.f32 %v1050, 0.6931472
    %v1052 = vlog2.pop %v1024
    %v1053 = vmul.f32 %v1052, 0.6931472
    %v1054 = vlog2.pop %v1025
    %v1055 = vmul.f32 %v1054, 0.6931472
    %v1056 = vlog2.pop %v1026
    %v1057 = vmul.f32 %v1056, 0.6931472
    %v1058 = vlog2.pop %v1027
    %v1059 = vmul.f32 %v1058, 0.6931472
    %v1060 = vsub.f32 %v965, %v1029
    %v1061 = vsub.f32 %v967, %v1031
    %v1062 = vsub.f32 %v969, %v1033
    %v1063 = vsub.f32 %v971, %v1035
    %v1064 = vsub.f32 %v973, %v1037
    %v1065 = vsub.f32 %v975, %v1039
    %v1066 = vsub.f32 %v977, %v1041
    %v1067 = vsub.f32 %v979, %v1043
    %v1068 = vsub.f32 %v981, %v1045
    %v1069 = vsub.f32 %v983, %v1047
    %v1070 = vsub.f32 %v985, %v1049
    %v1071 = vsub.f32 %v987, %v1051
    %v1072 = vsub.f32 %v989, %v1053
    %v1073 = vsub.f32 %v991, %v1055
    %v1074 = vsub.f32 %v993, %v1057
    %v1075 = vsub.f32 %v995, %v1059
    %vm1076 = vcmask 7168
    %1077 = vst.msk [vmem:[%s6] sm:$0xff] %vm1076, %v1060
    %1078 = vst.msk [vmem:[%s6 + $0x8] sm:$0xff] %vm1076, %v1061
    %1079 = vst.msk [vmem:[%s6 + $0x10] sm:$0xff] %vm1076, %v1062
    %1080 = vst.msk [vmem:[%s6 + $0x18] sm:$0xff] %vm1076, %v1063
    %1081 = vst.msk [vmem:[%s6 + $0x20] sm:$0xff] %vm1076, %v1064
    %1082 = vst.msk [vmem:[%s6 + $0x28] sm:$0xff] %vm1076, %v1065
    %1083 = vst.msk [vmem:[%s6 + $0x30] sm:$0xff] %vm1076, %v1066
    %1084 = vst.msk [vmem:[%s6 + $0x38] sm:$0xff] %vm1076, %v1067
    %1085 = vst.msk [vmem:[%s6 + $0x40] sm:$0xff] %vm1076, %v1068
    %1086 = vst.msk [vmem:[%s6 + $0x48] sm:$0xff] %vm1076, %v1069
    %1087 = vst.msk [vmem:[%s6 + $0x50] sm:$0xff] %vm1076, %v1070
    %1088 = vst.msk [vmem:[%s6 + $0x58] sm:$0xff] %vm1076, %v1071
    %1089 = vst.msk [vmem:[%s6 + $0x60] sm:$0xff] %vm1076, %v1072
    %1090 = vst.msk [vmem:[%s6 + $0x68] sm:$0xff] %vm1076, %v1073
    %1091 = vst.msk [vmem:[%s6 + $0x70] sm:$0xff] %vm1076, %v1074
    %1092 = vst.msk [vmem:[%s6 + $0x78] sm:$0xff] %vm1076, %v1075
  $region41: #{tpu_custom_call.1} parent=0 // pred_fallthru
    _
  // Predicated region
  $region42: #{tpu_custom_call.1} parent=0 // pred_check
    _
  $region43: #{tpu_custom_call.1} parent=0 // pred_check_branch
    %1094 = sbr.rel (0) target = $region45
  $region44: #{tpu_custom_call.1} parent=0 // pred_region
    _
  $region45: #{tpu_custom_call.1} parent=0 // pred_fallthru
    _
  // Predicated region
  $region46: #{tpu_custom_call.1} parent=0 // pred_check
    _
  $region47: #{tpu_custom_call.1} parent=0 // pred_check_branch
    %1096 = sbr.rel (0) target = $region49
  $region48: #{tpu_custom_call.1} parent=0 // pred_region
    _
  $region49: #{tpu_custom_call.1} parent=0 // pred_fallthru
    _

</llo_original>
